<compile_context>
chip_gen: v6e
topology: v6e:2x2x1
jax: 0.10.0
libtpu: 0.0.40
codegen_flags: <defaults>
</compile_context>

<pallas_src>
import functools

import jax
import jax.numpy as jnp
from jax import lax
from jax.experimental import pallas as pl
from jax.experimental.pallas import tpu as pltpu

_EPS = 1e-5
_LANE = 128
_SUBLANE = 8


def _round_up(x, m):
    return ((x + m - 1) // m) * m


def _cdiv(a, b):
    return (a + b - 1) // b


def _fused_autoencoder_kernel(x_ref, p_ref, out_ref, latent_ref, *,
                              layer_meta, n_enc_layers, eps, use_bf16):
    """Feature-major fused (Linear -> LayerNorm -> ReLU) x n_layers.

    x_ref:      [d_in0,     TM]  batch on lanes
    p_ref:      [P_rows, P_cols] packed (w | b | gamma | beta) for every layer
    out_ref:    [d_out_last, TM]
    latent_ref: [d_latent,   TM]
    """
    h = x_ref[...]                                        # f32 [d_in0, TM]
    for li, (r0, d_out, d_in) in enumerate(layer_meta):
        blk = p_ref[pl.ds(r0, d_out), :]                  # static slice, tiny
        w = blk[:, :d_in]                                 # [d_out, d_in]
        b = blk[:, d_in:d_in + 1]                         # [d_out, 1]
        g = blk[:, d_in + 1:d_in + 2]                     # [d_out, 1]
        beta = blk[:, d_in + 2:d_in + 3]                  # [d_out, 1]

        # Linear on the MXU: y = W @ h  (N = TM fills the lanes)
        if use_bf16:
            y = jnp.dot(w.astype(jnp.bfloat16), h.astype(jnp.bfloat16),
                        preferred_element_type=jnp.float32)
        else:
            y = jnp.dot(w, h, preferred_element_type=jnp.float32)
        y = y + b                                          # bias broadcast over lanes

        # LayerNorm over the feature (sublane) axis, PyTorch semantics
        mean = jnp.mean(y, axis=0, keepdims=True)          # [1, TM]
        centered = y - mean
        var = jnp.mean(centered * centered, axis=0, keepdims=True)
        scale = lax.rsqrt(var + eps)                       # EUP slot
        # fused affine + ReLU
        h = jnp.maximum(centered * scale * g + beta, 0.0)

        if li == n_enc_layers - 1:
            latent_ref[...] = h
    out_ref[...] = h


def _pack_params(layers):
    """Pack every layer's (w, b, gamma, beta) into one f32 slab + static metadata.

    Per-layer block (rows padded to a multiple of 8):
        cols [0, d_in)      -> W        (PyTorch layout [d_out, d_in])
        col   d_in          -> bias
        col   d_in + 1      -> gamma
        col   d_in + 2      -> beta
    """
    max_in = max(l["w"].shape[1] for l in layers)
    width = _round_up(max_in + 3, _LANE)
    blocks, meta, r = [], [], 0
    for layer in layers:
        w = layer["w"].astype(jnp.float32)
        d_out, d_in = w.shape
        rpad = _round_up(d_out, _SUBLANE)
        blk = jnp.zeros((rpad, width), jnp.float32)
        blk = blk.at[:d_out, :d_in].set(w)
        blk = blk.at[:d_out, d_in].set(layer["b"].reshape(-1).astype(jnp.float32))
        blk = blk.at[:d_out, d_in + 1].set(layer["gamma"].reshape(-1).astype(jnp.float32))
        blk = blk.at[:d_out, d_in + 2].set(layer["beta"].reshape(-1).astype(jnp.float32))
        blocks.append(blk)
        meta.append((r, d_out, d_in))
        r += rpad
    return jnp.concatenate(blocks, axis=0), tuple(meta)


def clust_autoencoder_forward(params, x, *, block_rows=4096, use_bf16=False):
    """Full encoder+decoder forward in a single pallas_call. Returns (output, latent)."""
    enc_layers = list(params["encoder"])
    dec_layers = list(params["decoder"])
    layers = enc_layers + dec_layers
    n_enc = len(enc_layers)

    B, d_in0 = x.shape
    assert d_in0 == layers[0]["w"].shape[1], "input feature dim mismatch"
    d_latent = enc_layers[-1]["w"].shape[0]
    d_out = dec_layers[-1]["w"].shape[0]

    packed, layer_meta = _pack_params(layers)

    # ---- choose batch (lane-axis) tiling ----
    b_lane = _round_up(B, _LANE)                       # lane granularity
    nb = max(1, _cdiv(b_lane, block_rows))
    if nb == 1 and b_lane >= 2 * _LANE:
        nb = 2                                         # v7x: give both TensorCores a tile
    tm = _round_up(_cdiv(b_lane, nb), _LANE)
    nb = _cdiv(b_lane, tm)
    b_pad = tm * nb

    # Feature-major input: [d_in0, b_pad] (transpose + lane pad in the wrapper).
    x_fm = jnp.transpose(x.astype(jnp.float32))
    if b_pad != B:
        x_fm = jnp.pad(x_fm, ((0, 0), (0, b_pad - B)))

    in_specs = [
        pl.BlockSpec((d_in0, tm), lambda i: (0, i)),
        pl.BlockSpec(packed.shape, lambda i: (0, 0)),  # single resident param DMA
    ]
    out_specs = (
        pl.BlockSpec((d_out, tm), lambda i: (0, i)),
        pl.BlockSpec((d_latent, tm), lambda i: (0, i)),
    )
    out_shape = (
        jax.ShapeDtypeStruct((d_out, b_pad), jnp.float32),
        jax.ShapeDtypeStruct((d_latent, b_pad), jnp.float32),
    )

    kernel = functools.partial(
        _fused_autoencoder_kernel,
        layer_meta=layer_meta,
        n_enc_layers=n_enc,
        eps=_EPS,
        use_bf16=use_bf16,
    )

    out_fm, latent_fm = pl.pallas_call(
        kernel,
        out_shape=out_shape,
        grid=(nb,),
        in_specs=in_specs,
        out_specs=out_specs,
        compiler_params=pltpu.CompilerParams(
            dimension_semantics=("parallel",),        # batch tiles independent
            vmem_limit_bytes=32 * 1024 * 1024,        # safe on v5e/v6e/v7x
        ),
    )(x_fm, packed)

    out = jnp.transpose(out_fm[:, :B])
    latent = jnp.transpose(latent_fm[:, :B])
    return out, latent


clust_autoencoder_forward_jit = jax.jit(
    clust_autoencoder_forward, static_argnames=("block_rows", "use_bf16"))


def _make_linear_params(key, d_in, d_out):
    # matches _init_weight: weight ~ N(0, 0.01), bias = 0; LayerNorm gamma=1, beta=0
    w = 0.01 * jax.random.normal(key, (d_out, d_in), dtype=jnp.float32)  # PyTorch layout
    b = jnp.zeros((d_out,), dtype=jnp.float32)
    gamma = jnp.ones((d_out,), dtype=jnp.float32)
    beta = jnp.zeros((d_out,), dtype=jnp.float32)
    return dict(w=w, b=b, gamma=gamma, beta=beta)


def build_clust_autoencoder_params(dims, seed=0):
    """Encoder walks dims forward, decoder walks dims reversed; every layer is
    Linear -> LayerNorm -> ReLU (default/final activations are all ReLU)."""
    key = jax.random.PRNGKey(seed)
    enc_dims = list(dims)
    dec_dims = list(dims)[::-1]
    params = {"encoder": [], "decoder": []}
    for d_in, d_out in zip(enc_dims[:-1], enc_dims[1:]):
        key, sub = jax.random.split(key)
        params["encoder"].append(_make_linear_params(sub, d_in, d_out))
    for d_in, d_out in zip(dec_dims[:-1], dec_dims[1:]):
        key, sub = jax.random.split(key)
        params["decoder"].append(_make_linear_params(sub, d_in, d_out))
    return params


def _reference_forward(params, x):
    """Pure-JAX reference for correctness check."""
    def block(h, layer):
        y = h @ layer["w"].T + layer["b"]
        mean = jnp.mean(y, axis=-1, keepdims=True)
        var = jnp.mean((y - mean) ** 2, axis=-1, keepdims=True)
        yn = (y - mean) / jnp.sqrt(var + _EPS)
        yn = yn * layer["gamma"] + layer["beta"]
        return jnp.maximum(yn, 0.0)

    h = x
    for layer in params["encoder"]:
        h = block(h, layer)
    latent = h
    for layer in params["decoder"]:
        h = block(h, layer)
    return h, latent


if __name__ == "__main__":
    # dims for the autoencoder: input 32 -> 16 -> latent 8, decoder mirrors back to 32
    dims = [32, 16, 8]
    batch = 8

    key = jax.random.PRNGKey(0)
    x = jax.random.normal(key, (batch, dims[0]), dtype=jnp.float32)

    params = build_clust_autoencoder_params(dims, seed=0)

    out, latent = clust_autoencoder_forward_jit(params, x)
    out = jax.block_until_ready(out)
    latent = jax.block_until_ready(latent)

    # sanity checks
    assert out.shape == (batch, dims[0]), out.shape
    assert latent.shape == (batch, dims[-1]), latent.shape

    ref_out, ref_latent = _reference_forward(params, x)
    assert jnp.allclose(out, ref_out, atol=1e-4, rtol=1e-4), "output mismatch vs reference"
    assert jnp.allclose(latent, ref_latent, atol=1e-4, rtol=1e-4), "latent mismatch vs reference"

    print("KERNEL_OK")
</pallas_src>

<mosaic_0001>
module attributes {stable_mosaic.version = 11 : i64} {
  func.func @_fused_autoencoder_kernel(%arg0: i32, %arg1: memref<32x128xf32, #tpu.memory_space<vmem>>, %arg2: memref<72x128xf32, #tpu.memory_space<vmem>>, %arg3: memref<32x128xf32, #tpu.memory_space<vmem>>, %arg4: memref<8x128xf32, #tpu.memory_space<vmem>>) attributes {dimension_semantics = [#tpu.dimension_semantics<parallel>], iteration_bounds = array<i64: 1>, scalar_prefetch = 0 : i64, scratch_operands = 0 : i64, tpu.core_type = #tpu.core_type<tc>, window_params = [{transform_indices = @transform_0, window_bounds = array<i64: 32, 128>}, {pipeline_mode = #tpu.pipeline_mode<synchronous>, transform_indices = @transform_1, window_bounds = array<i64: 72, 128>}, {transform_indices = @transform_2, window_bounds = array<i64: 32, 128>}, {transform_indices = @transform_3, window_bounds = array<i64: 8, 128>}]} {
    %c0 = arith.constant 0 : index
    %c0_0 = arith.constant 0 : index
    %0 = vector.load %arg1[%c0, %c0_0] : memref<32x128xf32, #tpu.memory_space<vmem>>, vector<32x128xf32>
    %c0_1 = arith.constant 0 : index
    %c0_2 = arith.constant 0 : index
    %1 = vector.load %arg2[%c0_1, %c0_2] : memref<72x128xf32, #tpu.memory_space<vmem>>, vector<16x128xf32>
    %2 = vector.extract_strided_slice %1 {offsets = [0, 0], sizes = [16, 32], strides = [1, 1]} : vector<16x128xf32> to vector<16x32xf32>
    %3 = vector.extract_strided_slice %1 {offsets = [0, 32], sizes = [16, 1], strides = [1, 1]} : vector<16x128xf32> to vector<16x1xf32>
    %4 = vector.extract_strided_slice %1 {offsets = [0, 33], sizes = [16, 1], strides = [1, 1]} : vector<16x128xf32> to vector<16x1xf32>
    %5 = vector.extract_strided_slice %1 {offsets = [0, 34], sizes = [16, 1], strides = [1, 1]} : vector<16x128xf32> to vector<16x1xf32>
    %cst = arith.constant dense<0.000000e+00> : vector<16x128xf32>
    %6 = tpu.matmul %2, %0, %cst {dimension_numbers = #tpu.dot_dimension_numbers<[1], [0], [0], [1], [0, 0, 1, 1], [], []>} : vector<16x32xf32>, vector<32x128xf32>, vector<16x128xf32> -> vector<16x128xf32>
    %7 = vector.broadcast %3 : vector<16x1xf32> to vector<16x128xf32>
    %8 = arith.addf %6, %7 : vector<16x128xf32>
    %cst_3 = arith.constant dense<0.000000e+00> : vector<128xf32>
    %9 = vector.multi_reduction <add>, %8, %cst_3 [0] : vector<16x128xf32> to vector<128xf32>
    %10 = vector.shape_cast %9 : vector<128xf32> to vector<1x128xf32>
    %cst_4 = arith.constant 1.600000e+01 : f32
    %11 = vector.broadcast %cst_4 : f32 to vector<1x128xf32>
    %12 = arith.divf %10, %11 : vector<1x128xf32>
    %13 = vector.broadcast %12 : vector<1x128xf32> to vector<16x128xf32>
    %14 = arith.subf %8, %13 : vector<16x128xf32>
    %15 = arith.mulf %14, %14 : vector<16x128xf32>
    %cst_5 = arith.constant dense<0.000000e+00> : vector<128xf32>
    %16 = vector.multi_reduction <add>, %15, %cst_5 [0] : vector<16x128xf32> to vector<128xf32>
    %17 = vector.shape_cast %16 : vector<128xf32> to vector<1x128xf32>
    %cst_6 = arith.constant 1.600000e+01 : f32
    %18 = vector.broadcast %cst_6 : f32 to vector<1x128xf32>
    %19 = arith.divf %17, %18 : vector<1x128xf32>
    %cst_7 = arith.constant 9.99999974E-6 : f32
    %20 = vector.broadcast %cst_7 : f32 to vector<1x128xf32>
    %21 = arith.addf %19, %20 : vector<1x128xf32>
    %22 = math.rsqrt %21 : vector<1x128xf32>
    %23 = vector.broadcast %22 : vector<1x128xf32> to vector<16x128xf32>
    %24 = arith.mulf %14, %23 : vector<16x128xf32>
    %25 = vector.broadcast %4 : vector<16x1xf32> to vector<16x128xf32>
    %26 = arith.mulf %24, %25 : vector<16x128xf32>
    %27 = vector.broadcast %5 : vector<16x1xf32> to vector<16x128xf32>
    %28 = arith.addf %26, %27 : vector<16x128xf32>
    %cst_8 = arith.constant 0.000000e+00 : f32
    %29 = vector.broadcast %cst_8 : f32 to vector<16x128xf32>
    %30 = arith.maximumf %28, %29 : vector<16x128xf32>
    %c16 = arith.constant 16 : index
    %c0_9 = arith.constant 0 : index
    %31 = vector.load %arg2[%c16, %c0_9] : memref<72x128xf32, #tpu.memory_space<vmem>>, vector<8x128xf32>
    %32 = vector.extract_strided_slice %31 {offsets = [0, 0], sizes = [8, 16], strides = [1, 1]} : vector<8x128xf32> to vector<8x16xf32>
    %33 = vector.extract_strided_slice %31 {offsets = [0, 16], sizes = [8, 1], strides = [1, 1]} : vector<8x128xf32> to vector<8x1xf32>
    %34 = vector.extract_strided_slice %31 {offsets = [0, 17], sizes = [8, 1], strides = [1, 1]} : vector<8x128xf32> to vector<8x1xf32>
    %35 = vector.extract_strided_slice %31 {offsets = [0, 18], sizes = [8, 1], strides = [1, 1]} : vector<8x128xf32> to vector<8x1xf32>
    %cst_10 = arith.constant dense<0.000000e+00> : vector<8x128xf32>
    %36 = tpu.matmul %32, %30, %cst_10 {dimension_numbers = #tpu.dot_dimension_numbers<[1], [0], [0], [1], [0, 0, 1, 1], [], []>} : vector<8x16xf32>, vector<16x128xf32>, vector<8x128xf32> -> vector<8x128xf32>
    %37 = vector.broadcast %33 : vector<8x1xf32> to vector<8x128xf32>
    %38 = arith.addf %36, %37 : vector<8x128xf32>
    %cst_11 = arith.constant dense<0.000000e+00> : vector<128xf32>
    %39 = vector.multi_reduction <add>, %38, %cst_11 [0] : vector<8x128xf32> to vector<128xf32>
    %40 = vector.shape_cast %39 : vector<128xf32> to vector<1x128xf32>
    %cst_12 = arith.constant 8.000000e+00 : f32
    %41 = vector.broadcast %cst_12 : f32 to vector<1x128xf32>
    %42 = arith.divf %40, %41 : vector<1x128xf32>
    %43 = vector.broadcast %42 : vector<1x128xf32> to vector<8x128xf32>
    %44 = arith.subf %38, %43 : vector<8x128xf32>
    %45 = arith.mulf %44, %44 : vector<8x128xf32>
    %cst_13 = arith.constant dense<0.000000e+00> : vector<128xf32>
    %46 = vector.multi_reduction <add>, %45, %cst_13 [0] : vector<8x128xf32> to vector<128xf32>
    %47 = vector.shape_cast %46 : vector<128xf32> to vector<1x128xf32>
    %cst_14 = arith.constant 8.000000e+00 : f32
    %48 = vector.broadcast %cst_14 : f32 to vector<1x128xf32>
    %49 = arith.divf %47, %48 : vector<1x128xf32>
    %cst_15 = arith.constant 9.99999974E-6 : f32
    %50 = vector.broadcast %cst_15 : f32 to vector<1x128xf32>
    %51 = arith.addf %49, %50 : vector<1x128xf32>
    %52 = math.rsqrt %51 : vector<1x128xf32>
    %53 = vector.broadcast %52 : vector<1x128xf32> to vector<8x128xf32>
    %54 = arith.mulf %44, %53 : vector<8x128xf32>
    %55 = vector.broadcast %34 : vector<8x1xf32> to vector<8x128xf32>
    %56 = arith.mulf %54, %55 : vector<8x128xf32>
    %57 = vector.broadcast %35 : vector<8x1xf32> to vector<8x128xf32>
    %58 = arith.addf %56, %57 : vector<8x128xf32>
    %cst_16 = arith.constant 0.000000e+00 : f32
    %59 = vector.broadcast %cst_16 : f32 to vector<8x128xf32>
    %60 = arith.maximumf %58, %59 : vector<8x128xf32>
    %c0_17 = arith.constant 0 : index
    %c0_18 = arith.constant 0 : index
    %61 = vector.load %arg4[%c0_17, %c0_18] : memref<8x128xf32, #tpu.memory_space<vmem>>, vector<8x128xf32>
    tpu.vector_store %arg4[%c0_17, %c0_18], %60 {strides = array<i32>} : memref<8x128xf32, #tpu.memory_space<vmem>>, vector<8x128xf32>,
    %c24 = arith.constant 24 : index
    %c0_19 = arith.constant 0 : index
    %62 = vector.load %arg2[%c24, %c0_19] : memref<72x128xf32, #tpu.memory_space<vmem>>, vector<16x128xf32>
    %63 = vector.extract_strided_slice %62 {offsets = [0, 0], sizes = [16, 8], strides = [1, 1]} : vector<16x128xf32> to vector<16x8xf32>
    %64 = vector.extract_strided_slice %62 {offsets = [0, 8], sizes = [16, 1], strides = [1, 1]} : vector<16x128xf32> to vector<16x1xf32>
    %65 = vector.extract_strided_slice %62 {offsets = [0, 9], sizes = [16, 1], strides = [1, 1]} : vector<16x128xf32> to vector<16x1xf32>
    %66 = vector.extract_strided_slice %62 {offsets = [0, 10], sizes = [16, 1], strides = [1, 1]} : vector<16x128xf32> to vector<16x1xf32>
    %cst_20 = arith.constant dense<0.000000e+00> : vector<16x128xf32>
    %67 = tpu.matmul %63, %60, %cst_20 {dimension_numbers = #tpu.dot_dimension_numbers<[1], [0], [0], [1], [0, 0, 1, 1], [], []>} : vector<16x8xf32>, vector<8x128xf32>, vector<16x128xf32> -> vector<16x128xf32>
    %68 = vector.broadcast %64 : vector<16x1xf32> to vector<16x128xf32>
    %69 = arith.addf %67, %68 : vector<16x128xf32>
    %cst_21 = arith.constant dense<0.000000e+00> : vector<128xf32>
    %70 = vector.multi_reduction <add>, %69, %cst_21 [0] : vector<16x128xf32> to vector<128xf32>
    %71 = vector.shape_cast %70 : vector<128xf32> to vector<1x128xf32>
    %cst_22 = arith.constant 1.600000e+01 : f32
    %72 = vector.broadcast %cst_22 : f32 to vector<1x128xf32>
    %73 = arith.divf %71, %72 : vector<1x128xf32>
    %74 = vector.broadcast %73 : vector<1x128xf32> to vector<16x128xf32>
    %75 = arith.subf %69, %74 : vector<16x128xf32>
    %76 = arith.mulf %75, %75 : vector<16x128xf32>
    %cst_23 = arith.constant dense<0.000000e+00> : vector<128xf32>
    %77 = vector.multi_reduction <add>, %76, %cst_23 [0] : vector<16x128xf32> to vector<128xf32>
    %78 = vector.shape_cast %77 : vector<128xf32> to vector<1x128xf32>
    %cst_24 = arith.constant 1.600000e+01 : f32
    %79 = vector.broadcast %cst_24 : f32 to vector<1x128xf32>
    %80 = arith.divf %78, %79 : vector<1x128xf32>
    %cst_25 = arith.constant 9.99999974E-6 : f32
    %81 = vector.broadcast %cst_25 : f32 to vector<1x128xf32>
    %82 = arith.addf %80, %81 : vector<1x128xf32>
    %83 = math.rsqrt %82 : vector<1x128xf32>
    %84 = vector.broadcast %83 : vector<1x128xf32> to vector<16x128xf32>
    %85 = arith.mulf %75, %84 : vector<16x128xf32>
    %86 = vector.broadcast %65 : vector<16x1xf32> to vector<16x128xf32>
    %87 = arith.mulf %85, %86 : vector<16x128xf32>
    %88 = vector.broadcast %66 : vector<16x1xf32> to vector<16x128xf32>
    %89 = arith.addf %87, %88 : vector<16x128xf32>
    %cst_26 = arith.constant 0.000000e+00 : f32
    %90 = vector.broadcast %cst_26 : f32 to vector<16x128xf32>
    %91 = arith.maximumf %89, %90 : vector<16x128xf32>
    %c40 = arith.constant 40 : index
    %c0_27 = arith.constant 0 : index
    %92 = vector.load %arg2[%c40, %c0_27] : memref<72x128xf32, #tpu.memory_space<vmem>>, vector<32x128xf32>
    %93 = vector.extract_strided_slice %92 {offsets = [0, 0], sizes = [32, 16], strides = [1, 1]} : vector<32x128xf32> to vector<32x16xf32>
    %94 = vector.extract_strided_slice %92 {offsets = [0, 16], sizes = [32, 1], strides = [1, 1]} : vector<32x128xf32> to vector<32x1xf32>
    %95 = vector.extract_strided_slice %92 {offsets = [0, 17], sizes = [32, 1], strides = [1, 1]} : vector<32x128xf32> to vector<32x1xf32>
    %96 = vector.extract_strided_slice %92 {offsets = [0, 18], sizes = [32, 1], strides = [1, 1]} : vector<32x128xf32> to vector<32x1xf32>
    %cst_28 = arith.constant dense<0.000000e+00> : vector<32x128xf32>
    %97 = tpu.matmul %93, %91, %cst_28 {dimension_numbers = #tpu.dot_dimension_numbers<[1], [0], [0], [1], [0, 0, 1, 1], [], []>} : vector<32x16xf32>, vector<16x128xf32>, vector<32x128xf32> -> vector<32x128xf32>
    %98 = vector.broadcast %94 : vector<32x1xf32> to vector<32x128xf32>
    %99 = arith.addf %97, %98 : vector<32x128xf32>
    %cst_29 = arith.constant dense<0.000000e+00> : vector<128xf32>
    %100 = vector.multi_reduction <add>, %99, %cst_29 [0] : vector<32x128xf32> to vector<128xf32>
    %101 = vector.shape_cast %100 : vector<128xf32> to vector<1x128xf32>
    %cst_30 = arith.constant 3.200000e+01 : f32
    %102 = vector.broadcast %cst_30 : f32 to vector<1x128xf32>
    %103 = arith.divf %101, %102 : vector<1x128xf32>
    %104 = vector.broadcast %103 : vector<1x128xf32> to vector<32x128xf32>
    %105 = arith.subf %99, %104 : vector<32x128xf32>
    %106 = arith.mulf %105, %105 : vector<32x128xf32>
    %cst_31 = arith.constant dense<0.000000e+00> : vector<128xf32>
    %107 = vector.multi_reduction <add>, %106, %cst_31 [0] : vector<32x128xf32> to vector<128xf32>
    %108 = vector.shape_cast %107 : vector<128xf32> to vector<1x128xf32>
    %cst_32 = arith.constant 3.200000e+01 : f32
    %109 = vector.broadcast %cst_32 : f32 to vector<1x128xf32>
    %110 = arith.divf %108, %109 : vector<1x128xf32>
    %cst_33 = arith.constant 9.99999974E-6 : f32
    %111 = vector.broadcast %cst_33 : f32 to vector<1x128xf32>
    %112 = arith.addf %110, %111 : vector<1x128xf32>
    %113 = math.rsqrt %112 : vector<1x128xf32>
    %114 = vector.broadcast %113 : vector<1x128xf32> to vector<32x128xf32>
    %115 = arith.mulf %105, %114 : vector<32x128xf32>
    %116 = vector.broadcast %95 : vector<32x1xf32> to vector<32x128xf32>
    %117 = arith.mulf %115, %116 : vector<32x128xf32>
    %118 = vector.broadcast %96 : vector<32x1xf32> to vector<32x128xf32>
    %119 = arith.addf %117, %118 : vector<32x128xf32>
    %cst_34 = arith.constant 0.000000e+00 : f32
    %120 = vector.broadcast %cst_34 : f32 to vector<32x128xf32>
    %121 = arith.maximumf %119, %120 : vector<32x128xf32>
    %c0_35 = arith.constant 0 : index
    %c0_36 = arith.constant 0 : index
    %122 = vector.load %arg3[%c0_35, %c0_36] : memref<32x128xf32, #tpu.memory_space<vmem>>, vector<32x128xf32>
    tpu.vector_store %arg3[%c0_35, %c0_36], %121 {strides = array<i32>} : memref<32x128xf32, #tpu.memory_space<vmem>>, vector<32x128xf32>,
    return
  }
  func.func @transform_0(%arg0: i32) -> (i32, i32) {
    %c0_i32 = arith.constant 0 : i32
    %c0_i32_0 = arith.constant 0 : i32
    return %c0_i32, %arg0 : i32, i32
  }
  func.func @transform_1(%arg0: i32) -> (i32, i32) {
    %c0_i32 = arith.constant 0 : i32
    %c0_i32_0 = arith.constant 0 : i32
    %c0_i32_1 = arith.constant 0 : i32
    return %c0_i32, %c0_i32_0 : i32, i32
  }
  func.func @transform_2(%arg0: i32) -> (i32, i32) {
    %c0_i32 = arith.constant 0 : i32
    %c0_i32_0 = arith.constant 0 : i32
    return %c0_i32, %arg0 : i32, i32
  }
  func.func @transform_3(%arg0: i32) -> (i32, i32) {
    %c0_i32 = arith.constant 0 : i32
    %c0_i32_0 = arith.constant 0 : i32
    return %c0_i32, %arg0 : i32, i32
  }
}

</mosaic_0001>

<llo_original>
// kernel: clust_autoencoder_forward.1
$region0: #{clust_autoencoder_forward.1}
  #allocation0 [shape = 'u32[]', space=smem, size = 0x4, offset = 0x4, fixed_abs, tag = 'smem constant byte address 0x4 - core index']
  #allocation1 [shape = 'u32[144,128]{1,0:T(1,128)}', space=vmem, size = 0x12000, scoped, tag = 'internal scratch']
  %s0 = inlined_call_operand.vmem [shape: f32[32,128], index: 0, kind: input, shape index: {}]
  %s1 = inlined_call_operand.vmem [shape: f32[72,128], index: 1, kind: input, shape index: {}]
  %s2 = inlined_call_operand.vmem [shape: f32[32,128], index: 2, kind: output, shape index: {0}]
  %s3 = inlined_call_operand.vmem [shape: f32[8,128], index: 3, kind: output, shape index: {1}]
  %4 = xla_tuple %s2, %s3
  %s5 = sld [smem:[#allocation0]]
  $region26: #{clust_autoencoder_forward.1} parent=0
    _
  %s7 = ssub.s32 1, %s5
  %s8 = scalar_select 0, %s7, %s5
  // Predicated region
  $region2: #{clust_autoencoder_forward.1} parent=0 // pred_check
    _
  $region3: #{clust_autoencoder_forward.1} parent=0 // pred_check_branch
    %10 = sbr.rel (0) target = $region5
  $region4: #{clust_autoencoder_forward.1} parent=0 // pred_region
    _
  $region5: #{clust_autoencoder_forward.1} parent=0 // pred_fallthru
    _
  // Predicated region
  $region6: #{clust_autoencoder_forward.1} parent=0 // pred_check
    _
  $region7: #{clust_autoencoder_forward.1} parent=0 // pred_check_branch
    %12 = sbr.rel (0) target = $region9
  $region8: #{clust_autoencoder_forward.1} parent=0 // pred_region
    _
  $region9: #{clust_autoencoder_forward.1} parent=0 // pred_fallthru
    _
  %v13 = vld [vmem:[%s0] sm:$0xff]
  %v14 = vld [vmem:[%s0 + $0x8] sm:$0xff]
  %v15 = vld [vmem:[%s0 + $0x10] sm:$0xff]
  %v16 = vld [vmem:[%s0 + $0x18] sm:$0xff]
  %v17 = vld [vmem:[%s1] sm:$0xff]
  %v18 = vld [vmem:[%s1 + $0x8] sm:$0xff]
  %20 = vset.pattern.permute.xlu0 32
  %21 = vperm.xlu0 %20, %v17
  %v22 = vpop.permute.xlu0 %21
  %25 = vset.pattern.permute.xlu0 32
  %26 = vperm.xlu0 %25, %v18
  %v27 = vpop.permute.xlu0 %26
  %vm29 = vcmask 261120
  %v30 = vsel %vm29, %v17, 0
  %v32 = vsel %vm29, %v18, 0
  %34 = vmatprep.subr.mxu0 0.0
  %35 = vmatpush1.msra.mxu0 0.0
  %36 = vmatprep.subr.mxu0 0.0
  %37 = vmatpush1.msra.mxu0 0.0
  %38 = vmatprep.subr.mxu0 0.0
  %39 = vmatpush1.msra.mxu0 0.0
  %40 = vmatprep.subr.mxu0 0.0
  %41 = vmatpush1.msra.mxu0 0.0
  %42 = vmatprep.subr.mxu0 0.0
  %43 = vmatpush1.msra.mxu0 0.0
  %44 = vmatprep.subr.mxu0 0.0
  %45 = vmatpush1.msra.mxu0 0.0
  %46 = vmatprep.subr.mxu0 0.0
  %47 = vmatpush1.msra.mxu0 0.0
  %48 = vmatprep.subr.mxu0 0.0
  %49 = vmatpush1.msra.mxu0 0.0
  %50 = vmatprep.subr.mxu0 0.0
  %51 = vmatpush1.msra.mxu0 0.0
  %52 = vmatprep.subr.mxu0 0.0
  %53 = vmatpush1.msra.mxu0 0.0
  %54 = vmatprep.subr.mxu0 0.0
  %55 = vmatpush1.msra.mxu0 0.0
  %56 = vmatprep.subr.mxu0 0.0
  %57 = vmatpush1.msra.mxu0 0.0
  %58 = vmatprep.subr.mxu0 0.0
  %59 = vmatpush1.msra.mxu0 %v16
  %60 = vmatprep.subr.mxu0 0.0
  %61 = vmatpush1.msra.mxu0 %v15
  %62 = vmatprep.subr.mxu0 0.0
  %63 = vmatpush1.msra.mxu0 %v14
  %64 = vmatprep.subr.mxu0 0.0
  %65 = vmatpush1.msra.mxu0 %v13
  %66 = vmatprep.subr.mxu0 0.0
  %67 = vmatpush2.msra.mxu0 0.0
  %68 = vmatprep.subr.mxu0 0.0
  %69 = vmatpush2.msra.mxu0 0.0
  %70 = vmatprep.subr.mxu0 0.0
  %71 = vmatpush2.msra.mxu0 0.0
  %72 = vmatprep.subr.mxu0 0.0
  %73 = vmatpush2.msra.mxu0 0.0
  %74 = vmatprep.subr.mxu0 0.0
  %75 = vmatpush2.msra.mxu0 0.0
  %76 = vmatprep.subr.mxu0 0.0
  %77 = vmatpush2.msra.mxu0 0.0
  %78 = vmatprep.subr.mxu0 0.0
  %79 = vmatpush2.msra.mxu0 0.0
  %80 = vmatprep.subr.mxu0 0.0
  %81 = vmatpush2.msra.mxu0 0.0
  %82 = vmatprep.subr.mxu0 0.0
  %83 = vmatpush2.msra.mxu0 0.0
  %84 = vmatprep.subr.mxu0 0.0
  %85 = vmatpush2.msra.mxu0 0.0
  %86 = vmatprep.subr.mxu0 0.0
  %87 = vmatpush2.msra.mxu0 0.0
  %88 = vmatprep.subr.mxu0 0.0
  %89 = vmatpush2.msra.mxu0 0.0
  %90 = vmatprep.subr.mxu0 0.0
  %91 = vmatpush2.msra.mxu0 0.0
  %92 = vmatprep.subr.mxu0 0.0
  %93 = vmatpush2.msra.mxu0 0.0
  %94 = vmatprep.subr.mxu0 0.0
  %95 = vmatpush2.msra.mxu0 0.0
  %96 = vmatprep.subr.mxu0 0.0
  %97 = vmatpush2.msra.mxu0 0.0
  %98 = vmatprep.mubr.f32.mxu0 0.0
  %99 = vmatmul.mubr.f32.gmra.mxu0 %v30
  %v100 = vpop.f32.mrf.mxu0
  %v101 = vadd.f32 %v22, %v100
  %v102 = vpop.f32.mrf.mxu0
  %103 = vmatprep.mubr.f32.mxu0 0.0
  %104 = vmatmul.mubr.f32.gmra.mxu0 %v32
  %v105 = vpop.f32.mrf.mxu0
  %v106 = vadd.f32 %v27, %v105
  %v107 = vpop.f32.mrf.mxu0
  %108 = vdwg.mxu0
  %v109 = vadd.f32 %v101, %v106
  %v110 = vrot.slane %v109, 4
  %v111 = vadd.f32 %v109, %v110
  %v112 = vrot.slane %v111, 2
  %v113 = vadd.f32 %v111, %v112
  %v114 = vrot.slane %v113, 1
  %v115 = vadd.f32 %v113, %v114
  %v116 = vrcp.pop 16.0
  %v117 = vmul.f32 %v115, %v116
  %v118 = vsub.f32 %v101, %v117
  %v119 = vsub.f32 %v106, %v117
  %v120 = vmul.f32 %v118, %v118
  %v121 = vmul.f32 %v119, %v119
  %v122 = vadd.f32 %v120, %v121
  %v123 = vrot.slane %v122, 4
  %v124 = vadd.f32 %v122, %v123
  %v125 = vrot.slane %v124, 2
  %v126 = vadd.f32 %v124, %v125
  %v127 = vrot.slane %v126, 1
  %v128 = vadd.f32 %v126, %v127
  %v129 = vmul.f32 %v128, %v116
  %v130 = vadd.f32 %v129, 1e-05
  %v131 = vrsqrt.pop %v130
  %v132 = vmul.f32 %v118, %v131
  %v133 = vmul.f32 %v119, %v131
  %134 = vset.pattern.permute.xlu0 33
  %135 = vperm.xlu0 %134, %v17
  %v136 = vpop.permute.xlu0 %135
  %138 = vset.pattern.permute.xlu0 33
  %139 = vperm.xlu0 %138, %v18
  %v140 = vpop.permute.xlu0 %139
  %v142 = vmul.f32 %v132, %v136
  %v143 = vmul.f32 %v133, %v140
  %144 = vset.pattern.permute.xlu0 34
  %145 = vperm.xlu0 %144, %v17
  %v146 = vpop.permute.xlu0 %145
  %148 = vset.pattern.permute.xlu0 34
  %149 = vperm.xlu0 %148, %v18
  %v150 = vpop.permute.xlu0 %149
  %v152 = vadd.f32 %v142, %v146
  %v153 = vadd.f32 %v143, %v150
  %v154 = vmax.f32 %v152, 0.0
  %v155 = vmax.f32 %v153, 0.0
  %v156 = vld [vmem:[%s1 + $0x10] sm:$0xff]
  %158 = vset.pattern.permute.xlu0 16
  %159 = vperm.xlu0 %158, %v156
  %v160 = vpop.permute.xlu0 %159
  %vm162 = vcmask 130048
  %v163 = vsel %vm162, %v156, 0
  %165 = vmatprep.subr.mxu0 0.0
  %166 = vmatpush1.msra.mxu0 0.0
  %167 = vmatprep.subr.mxu0 0.0
  %168 = vmatpush1.msra.mxu0 0.0
  %169 = vmatprep.subr.mxu0 0.0
  %170 = vmatpush1.msra.mxu0 0.0
  %171 = vmatprep.subr.mxu0 0.0
  %172 = vmatpush1.msra.mxu0 0.0
  %173 = vmatprep.subr.mxu0 0.0
  %174 = vmatpush1.msra.mxu0 0.0
  %175 = vmatprep.subr.mxu0 0.0
  %176 = vmatpush1.msra.mxu0 0.0
  %177 = vmatprep.subr.mxu0 0.0
  %178 = vmatpush1.msra.mxu0 0.0
  %179 = vmatprep.subr.mxu0 0.0
  %180 = vmatpush1.msra.mxu0 0.0
  %181 = vmatprep.subr.mxu0 0.0
  %182 = vmatpush1.msra.mxu0 0.0
  %183 = vmatprep.subr.mxu0 0.0
  %184 = vmatpush1.msra.mxu0 0.0
  %185 = vmatprep.subr.mxu0 0.0
  %186 = vmatpush1.msra.mxu0 0.0
  %187 = vmatprep.subr.mxu0 0.0
  %188 = vmatpush1.msra.mxu0 0.0
  %189 = vmatprep.subr.mxu0 0.0
  %190 = vmatpush1.msra.mxu0 0.0
  %191 = vmatprep.subr.mxu0 0.0
  %192 = vmatpush1.msra.mxu0 0.0
  %193 = vmatprep.subr.mxu0 0.0
  %194 = vmatpush1.msra.mxu0 %v155
  %195 = vmatprep.subr.mxu0 0.0
  %196 = vmatpush1.msra.mxu0 %v154
  %197 = vmatprep.subr.mxu0 0.0
  %198 = vmatpush2.msra.mxu0 0.0
  %199 = vmatprep.subr.mxu0 0.0
  %200 = vmatpush2.msra.mxu0 0.0
  %201 = vmatprep.subr.mxu0 0.0
  %202 = vmatpush2.msra.mxu0 0.0
  %203 = vmatprep.subr.mxu0 0.0
  %204 = vmatpush2.msra.mxu0 0.0
  %205 = vmatprep.subr.mxu0 0.0
  %206 = vmatpush2.msra.mxu0 0.0
  %207 = vmatprep.subr.mxu0 0.0
  %208 = vmatpush2.msra.mxu0 0.0
  %209 = vmatprep.subr.mxu0 0.0
  %210 = vmatpush2.msra.mxu0 0.0
  %211 = vmatprep.subr.mxu0 0.0
  %212 = vmatpush2.msra.mxu0 0.0
  %213 = vmatprep.subr.mxu0 0.0
  %214 = vmatpush2.msra.mxu0 0.0
  %215 = vmatprep.subr.mxu0 0.0
  %216 = vmatpush2.msra.mxu0 0.0
  %217 = vmatprep.subr.mxu0 0.0
  %218 = vmatpush2.msra.mxu0 0.0
  %219 = vmatprep.subr.mxu0 0.0
  %220 = vmatpush2.msra.mxu0 0.0
  %221 = vmatprep.subr.mxu0 0.0
  %222 = vmatpush2.msra.mxu0 0.0
  %223 = vmatprep.subr.mxu0 0.0
  %224 = vmatpush2.msra.mxu0 0.0
  %225 = vmatprep.subr.mxu0 0.0
  %226 = vmatpush2.msra.mxu0 0.0
  %227 = vmatprep.subr.mxu0 0.0
  %228 = vmatpush2.msra.mxu0 0.0
  %229 = vmatprep.mubr.f32.mxu0 0.0
  %230 = vmatmul.mubr.f32.gmra.mxu0 %v163
  %v231 = vpop.f32.mrf.mxu0
  %v232 = vadd.f32 %v160, %v231
  %v233 = vpop.f32.mrf.mxu0
  %234 = vdwg.mxu0
  %v235 = vrot.slane %v232, 4
  %v236 = vadd.f32 %v232, %v235
  %v237 = vrot.slane %v236, 2
  %v238 = vadd.f32 %v236, %v237
  %v239 = vrot.slane %v238, 1
  %v240 = vadd.f32 %v238, %v239
  %v241 = vrcp.pop 8.0
  %v242 = vmul.f32 %v240, %v241
  %v243 = vsub.f32 %v232, %v242
  %v244 = vmul.f32 %v243, %v243
  %v245 = vrot.slane %v244, 4
  %v246 = vadd.f32 %v244, %v245
  %v247 = vrot.slane %v246, 2
  %v248 = vadd.f32 %v246, %v247
  %v249 = vrot.slane %v248, 1
  %v250 = vadd.f32 %v248, %v249
  %v251 = vmul.f32 %v250, %v241
  %v252 = vadd.f32 %v251, 1e-05
  %v253 = vrsqrt.pop %v252
  %v254 = vmul.f32 %v243, %v253
  %255 = vset.pattern.permute.xlu0 17
  %256 = vperm.xlu0 %255, %v156
  %v257 = vpop.permute.xlu0 %256
  %v259 = vmul.f32 %v254, %v257
  %260 = vset.pattern.permute.xlu0 18
  %261 = vperm.xlu0 %260, %v156
  %v262 = vpop.permute.xlu0 %261
  %v264 = vadd.f32 %v259, %v262
  %v265 = vmax.f32 %v264, 0.0
  %266 = vst [vmem:[%s3] sm:$0xff] %v265
  %v267 = vld [vmem:[%s1 + $0x18] sm:$0xff]
  %v268 = vld [vmem:[%s1 + $0x20] sm:$0xff]
  %270 = vset.pattern.permute.xlu0 8
  %271 = vperm.xlu0 %270, %v267
  %v272 = vpop.permute.xlu0 %271
  %275 = vset.pattern.permute.xlu0 8
  %276 = vperm.xlu0 %275, %v268
  %v277 = vpop.permute.xlu0 %276
  %vm279 = vcmask 64512
  %v280 = vsel %vm279, %v267, 0
  %v282 = vsel %vm279, %v268, 0
  %284 = vmatprep.subr.mxu0 0.0
  %285 = vmatpush1.msra.mxu0 0.0
  %286 = vmatprep.subr.mxu0 0.0
  %287 = vmatpush1.msra.mxu0 0.0
  %288 = vmatprep.subr.mxu0 0.0
  %289 = vmatpush1.msra.mxu0 0.0
  %290 = vmatprep.subr.mxu0 0.0
  %291 = vmatpush1.msra.mxu0 0.0
  %292 = vmatprep.subr.mxu0 0.0
  %293 = vmatpush1.msra.mxu0 0.0
  %294 = vmatprep.subr.mxu0 0.0
  %295 = vmatpush1.msra.mxu0 0.0
  %296 = vmatprep.subr.mxu0 0.0
  %297 = vmatpush1.msra.mxu0 0.0
  %298 = vmatprep.subr.mxu0 0.0
  %299 = vmatpush1.msra.mxu0 0.0
  %300 = vmatprep.subr.mxu0 0.0
  %301 = vmatpush1.msra.mxu0 0.0
  %302 = vmatprep.subr.mxu0 0.0
  %303 = vmatpush1.msra.mxu0 0.0
  %304 = vmatprep.subr.mxu0 0.0
  %305 = vmatpush1.msra.mxu0 0.0
  %306 = vmatprep.subr.mxu0 0.0
  %307 = vmatpush1.msra.mxu0 0.0
  %308 = vmatprep.subr.mxu0 0.0
  %309 = vmatpush1.msra.mxu0 0.0
  %310 = vmatprep.subr.mxu0 0.0
  %311 = vmatpush1.msra.mxu0 0.0
  %312 = vmatprep.subr.mxu0 0.0
  %313 = vmatpush1.msra.mxu0 0.0
  %314 = vmatprep.subr.mxu0 0.0
  %315 = vmatpush1.msra.mxu0 %v265
  %316 = vmatprep.subr.mxu0 0.0
  %317 = vmatpush2.msra.mxu0 0.0
  %318 = vmatprep.subr.mxu0 0.0
  %319 = vmatpush2.msra.mxu0 0.0
  %320 = vmatprep.subr.mxu0 0.0
  %321 = vmatpush2.msra.mxu0 0.0
  %322 = vmatprep.subr.mxu0 0.0
  %323 = vmatpush2.msra.mxu0 0.0
  %324 = vmatprep.subr.mxu0 0.0
  %325 = vmatpush2.msra.mxu0 0.0
  %326 = vmatprep.subr.mxu0 0.0
  %327 = vmatpush2.msra.mxu0 0.0
  %328 = vmatprep.subr.mxu0 0.0
  %329 = vmatpush2.msra.mxu0 0.0
  %330 = vmatprep.subr.mxu0 0.0
  %331 = vmatpush2.msra.mxu0 0.0
  %332 = vmatprep.subr.mxu0 0.0
  %333 = vmatpush2.msra.mxu0 0.0
  %334 = vmatprep.subr.mxu0 0.0
  %335 = vmatpush2.msra.mxu0 0.0
  %336 = vmatprep.subr.mxu0 0.0
  %337 = vmatpush2.msra.mxu0 0.0
  %338 = vmatprep.subr.mxu0 0.0
  %339 = vmatpush2.msra.mxu0 0.0
  %340 = vmatprep.subr.mxu0 0.0
  %341 = vmatpush2.msra.mxu0 0.0
  %342 = vmatprep.subr.mxu0 0.0
  %343 = vmatpush2.msra.mxu0 0.0
  %344 = vmatprep.subr.mxu0 0.0
  %345 = vmatpush2.msra.mxu0 0.0
  %346 = vmatprep.subr.mxu0 0.0
  %347 = vmatpush2.msra.mxu0 0.0
  %348 = vmatprep.mubr.f32.mxu0 0.0
  %349 = vmatmul.mubr.f32.gmra.mxu0 %v280
  %v350 = vpop.f32.mrf.mxu0
  %v351 = vadd.f32 %v272, %v350
  %v352 = vpop.f32.mrf.mxu0
  %353 = vmatprep.mubr.f32.mxu0 0.0
  %354 = vmatmul.mubr.f32.gmra.mxu0 %v282
  %v355 = vpop.f32.mrf.mxu0
  %v356 = vadd.f32 %v277, %v355
  %v357 = vpop.f32.mrf.mxu0
  %358 = vdwg.mxu0
  %v359 = vadd.f32 %v351, %v356
  %v360 = vrot.slane %v359, 4
  %v361 = vadd.f32 %v359, %v360
  %v362 = vrot.slane %v361, 2
  %v363 = vadd.f32 %v361, %v362
  %v364 = vrot.slane %v363, 1
  %v365 = vadd.f32 %v363, %v364
  %v366 = vmul.f32 %v365, %v116
  %v367 = vsub.f32 %v351, %v366
  %v368 = vsub.f32 %v356, %v366
  %v369 = vmul.f32 %v367, %v367
  %v370 = vmul.f32 %v368, %v368
  %v371 = vadd.f32 %v369, %v370
  %v372 = vrot.slane %v371, 4
  %v373 = vadd.f32 %v371, %v372
  %v374 = vrot.slane %v373, 2
  %v375 = vadd.f32 %v373, %v374
  %v376 = vrot.slane %v375, 1
  %v377 = vadd.f32 %v375, %v376
  %v378 = vmul.f32 %v377, %v116
  %v379 = vadd.f32 %v378, 1e-05
  %v380 = vrsqrt.pop %v379
  %v381 = vmul.f32 %v367, %v380
  %v382 = vmul.f32 %v368, %v380
  %383 = vset.pattern.permute.xlu0 9
  %384 = vperm.xlu0 %383, %v267
  %v385 = vpop.permute.xlu0 %384
  %387 = vset.pattern.permute.xlu0 9
  %388 = vperm.xlu0 %387, %v268
  %v389 = vpop.permute.xlu0 %388
  %v391 = vmul.f32 %v381, %v385
  %v392 = vmul.f32 %v382, %v389
  %393 = vset.pattern.permute.xlu0 10
  %394 = vperm.xlu0 %393, %v267
  %v395 = vpop.permute.xlu0 %394
  %397 = vset.pattern.permute.xlu0 10
  %398 = vperm.xlu0 %397, %v268
  %v399 = vpop.permute.xlu0 %398
  %v401 = vadd.f32 %v391, %v395
  %v402 = vadd.f32 %v392, %v399
  %v403 = vmax.f32 %v401, 0.0
  %v404 = vmax.f32 %v402, 0.0
  %v405 = vld [vmem:[%s1 + $0x28] sm:$0xff]
  %v406 = vld [vmem:[%s1 + $0x30] sm:$0xff]
  %v407 = vld [vmem:[%s1 + $0x38] sm:$0xff]
  %v408 = vld [vmem:[%s1 + $0x40] sm:$0xff]
  %410 = vset.pattern.permute.xlu0 16
  %411 = vperm.xlu0 %410, %v405
  %v412 = vpop.permute.xlu0 %411
  %415 = vset.pattern.permute.xlu0 16
  %416 = vperm.xlu0 %415, %v406
  %v417 = vpop.permute.xlu0 %416
  %420 = vset.pattern.permute.xlu0 16
  %421 = vperm.xlu0 %420, %v407
  %v422 = vpop.permute.xlu0 %421
  %425 = vset.pattern.permute.xlu0 16
  %426 = vperm.xlu0 %425, %v408
  %v427 = vpop.permute.xlu0 %426
  %v429 = vsel %vm162, %v405, 0
  %v431 = vsel %vm162, %v406, 0
  %v433 = vsel %vm162, %v407, 0
  %v435 = vsel %vm162, %v408, 0
  %437 = vmatprep.subr.mxu0 0.0
  %438 = vmatpush1.msra.mxu0 0.0
  %439 = vmatprep.subr.mxu0 0.0
  %440 = vmatpush1.msra.mxu0 0.0
  %441 = vmatprep.subr.mxu0 0.0
  %442 = vmatpush1.msra.mxu0 0.0
  %443 = vmatprep.subr.mxu0 0.0
  %444 = vmatpush1.msra.mxu0 0.0
  %445 = vmatprep.subr.mxu0 0.0
  %446 = vmatpush1.msra.mxu0 0.0
  %447 = vmatprep.subr.mxu0 0.0
  %448 = vmatpush1.msra.mxu0 0.0
  %449 = vmatprep.subr.mxu0 0.0
  %450 = vmatpush1.msra.mxu0 0.0
  %451 = vmatprep.subr.mxu0 0.0
  %452 = vmatpush1.msra.mxu0 0.0
  %453 = vmatprep.subr.mxu0 0.0
  %454 = vmatpush1.msra.mxu0 0.0
  %455 = vmatprep.subr.mxu0 0.0
  %456 = vmatpush1.msra.mxu0 0.0
  %457 = vmatprep.subr.mxu0 0.0
  %458 = vmatpush1.msra.mxu0 0.0
  %459 = vmatprep.subr.mxu0 0.0
  %460 = vmatpush1.msra.mxu0 0.0
  %461 = vmatprep.subr.mxu0 0.0
  %462 = vmatpush1.msra.mxu0 0.0
  %463 = vmatprep.subr.mxu0 0.0
  %464 = vmatpush1.msra.mxu0 0.0
  %465 = vmatprep.subr.mxu0 0.0
  %466 = vmatpush1.msra.mxu0 %v404
  %467 = vmatprep.subr.mxu0 0.0
  %468 = vmatpush1.msra.mxu0 %v403
  %469 = vmatprep.subr.mxu0 0.0
  %470 = vmatpush2.msra.mxu0 0.0
  %471 = vmatprep.subr.mxu0 0.0
  %472 = vmatpush2.msra.mxu0 0.0
  %473 = vmatprep.subr.mxu0 0.0
  %474 = vmatpush2.msra.mxu0 0.0
  %475 = vmatprep.subr.mxu0 0.0
  %476 = vmatpush2.msra.mxu0 0.0
  %477 = vmatprep.subr.mxu0 0.0
  %478 = vmatpush2.msra.mxu0 0.0
  %479 = vmatprep.subr.mxu0 0.0
  %480 = vmatpush2.msra.mxu0 0.0
  %481 = vmatprep.subr.mxu0 0.0
  %482 = vmatpush2.msra.mxu0 0.0
  %483 = vmatprep.subr.mxu0 0.0
  %484 = vmatpush2.msra.mxu0 0.0
  %485 = vmatprep.subr.mxu0 0.0
  %486 = vmatpush2.msra.mxu0 0.0
  %487 = vmatprep.subr.mxu0 0.0
  %488 = vmatpush2.msra.mxu0 0.0
  %489 = vmatprep.subr.mxu0 0.0
  %490 = vmatpush2.msra.mxu0 0.0
  %491 = vmatprep.subr.mxu0 0.0
  %492 = vmatpush2.msra.mxu0 0.0
  %493 = vmatprep.subr.mxu0 0.0
  %494 = vmatpush2.msra.mxu0 0.0
  %495 = vmatprep.subr.mxu0 0.0
  %496 = vmatpush2.msra.mxu0 0.0
  %497 = vmatprep.subr.mxu0 0.0
  %498 = vmatpush2.msra.mxu0 0.0
  %499 = vmatprep.subr.mxu0 0.0
  %500 = vmatpush2.msra.mxu0 0.0
  %501 = vmatprep.mubr.f32.mxu0 0.0
  %502 = vmatmul.mubr.f32.gmra.mxu0 %v429
  %v503 = vpop.f32.mrf.mxu0
  %v504 = vadd.f32 %v412, %v503
  %v505 = vpop.f32.mrf.mxu0
  %506 = vmatprep.mubr.f32.mxu0 0.0
  %507 = vmatmul.mubr.f32.gmra.mxu0 %v431
  %v508 = vpop.f32.mrf.mxu0
  %v509 = vadd.f32 %v417, %v508
  %v510 = vpop.f32.mrf.mxu0
  %511 = vmatprep.mubr.f32.mxu0 0.0
  %512 = vmatmul.mubr.f32.gmra.mxu0 %v433
  %v513 = vpop.f32.mrf.mxu0
  %v514 = vadd.f32 %v422, %v513
  %v515 = vpop.f32.mrf.mxu0
  %516 = vmatprep.mubr.f32.mxu0 0.0
  %517 = vmatmul.mubr.f32.gmra.mxu0 %v435
  %v518 = vpop.f32.mrf.mxu0
  %v519 = vadd.f32 %v427, %v518
  %v520 = vpop.f32.mrf.mxu0
  %521 = vdwg.mxu0
  %v522 = vadd.f32 %v504, %v509
  %v523 = vadd.f32 %v522, %v514
  %v524 = vadd.f32 %v523, %v519
  %v525 = vrot.slane %v524, 4
  %v526 = vadd.f32 %v524, %v525
  %v527 = vrot.slane %v526, 2
  %v528 = vadd.f32 %v526, %v527
  %v529 = vrot.slane %v528, 1
  %v530 = vadd.f32 %v528, %v529
  %v531 = vrcp.pop 32.0
  %v532 = vmul.f32 %v530, %v531
  %v533 = vsub.f32 %v504, %v532
  %v534 = vsub.f32 %v509, %v532
  %v535 = vsub.f32 %v514, %v532
  %v536 = vsub.f32 %v519, %v532
  %v537 = vmul.f32 %v533, %v533
  %v538 = vmul.f32 %v534, %v534
  %v539 = vmul.f32 %v535, %v535
  %v540 = vmul.f32 %v536, %v536
  %v541 = vadd.f32 %v537, %v538
  %v542 = vadd.f32 %v541, %v539
  %v543 = vadd.f32 %v542, %v540
  %v544 = vrot.slane %v543, 4
  %v545 = vadd.f32 %v543, %v544
  %v546 = vrot.slane %v545, 2
  %v547 = vadd.f32 %v545, %v546
  %v548 = vrot.slane %v547, 1
  %v549 = vadd.f32 %v547, %v548
  %v550 = vmul.f32 %v549, %v531
  %v551 = vadd.f32 %v550, 1e-05
  %v552 = vrsqrt.pop %v551
  %v553 = vmul.f32 %v533, %v552
  %v554 = vmul.f32 %v534, %v552
  %v555 = vmul.f32 %v535, %v552
  %v556 = vmul.f32 %v536, %v552
  %557 = vset.pattern.permute.xlu0 17
  %558 = vperm.xlu0 %557, %v405
  %v559 = vpop.permute.xlu0 %558
  %561 = vset.pattern.permute.xlu0 17
  %562 = vperm.xlu0 %561, %v406
  %v563 = vpop.permute.xlu0 %562
  %565 = vset.pattern.permute.xlu0 17
  %566 = vperm.xlu0 %565, %v407
  %v567 = vpop.permute.xlu0 %566
  %569 = vset.pattern.permute.xlu0 17
  %570 = vperm.xlu0 %569, %v408
  %v571 = vpop.permute.xlu0 %570
  %v573 = vmul.f32 %v553, %v559
  %v574 = vmul.f32 %v554, %v563
  %v575 = vmul.f32 %v555, %v567
  %v576 = vmul.f32 %v556, %v571
  %577 = vset.pattern.permute.xlu0 18
  %578 = vperm.xlu0 %577, %v405
  %v579 = vpop.permute.xlu0 %578
  %581 = vset.pattern.permute.xlu0 18
  %582 = vperm.xlu0 %581, %v406
  %v583 = vpop.permute.xlu0 %582
  %585 = vset.pattern.permute.xlu0 18
  %586 = vperm.xlu0 %585, %v407
  %v587 = vpop.permute.xlu0 %586
  %589 = vset.pattern.permute.xlu0 18
  %590 = vperm.xlu0 %589, %v408
  %v591 = vpop.permute.xlu0 %590
  %v593 = vadd.f32 %v573, %v579
  %v594 = vadd.f32 %v574, %v583
  %v595 = vadd.f32 %v575, %v587
  %v596 = vadd.f32 %v576, %v591
  %v597 = vmax.f32 %v593, 0.0
  %v598 = vmax.f32 %v594, 0.0
  %v599 = vmax.f32 %v595, 0.0
  %v600 = vmax.f32 %v596, 0.0
  %601 = vst [vmem:[%s2] sm:$0xff] %v597
  %602 = vst [vmem:[%s2 + $0x8] sm:$0xff] %v598
  %603 = vst [vmem:[%s2 + $0x10] sm:$0xff] %v599
  %604 = vst [vmem:[%s2 + $0x18] sm:$0xff] %v600
  // Predicated region
  $region10: #{clust_autoencoder_forward.1} parent=0 // pred_check
    _
  $region11: #{clust_autoencoder_forward.1} parent=0 // pred_check_branch
    %606 = sbr.rel (0) target = $region13
  $region12: #{clust_autoencoder_forward.1} parent=0 // pred_region
    _
  $region13: #{clust_autoencoder_forward.1} parent=0 // pred_fallthru
    _
  // Predicated region
  $region14: #{clust_autoencoder_forward.1} parent=0 // pred_check
    _
  $region15: #{clust_autoencoder_forward.1} parent=0 // pred_check_branch
    %608 = sbr.rel (0) target = $region17
  $region16: #{clust_autoencoder_forward.1} parent=0 // pred_region
    _
  $region17: #{clust_autoencoder_forward.1} parent=0 // pred_fallthru
    _
  // Predicated region
  $region18: #{clust_autoencoder_forward.1} parent=0 // pred_check
    _
  $region19: #{clust_autoencoder_forward.1} parent=0 // pred_check_branch
    %610 = sbr.rel (0) target = $region21
  $region20: #{clust_autoencoder_forward.1} parent=0 // pred_region
    _
  $region21: #{clust_autoencoder_forward.1} parent=0 // pred_fallthru
    _
  // Predicated region
  $region22: #{clust_autoencoder_forward.1} parent=0 // pred_check
    _
  $region23: #{clust_autoencoder_forward.1} parent=0 // pred_check_branch
    %612 = sbr.rel (0) target = $region25
  $region24: #{clust_autoencoder_forward.1} parent=0 // pred_region
    _
  $region25: #{clust_autoencoder_forward.1} parent=0 // pred_fallthru
    _

</llo_original>
